<compile_context>
chip_gen: v5e
topology: v5e:2x2
jax: 0.10.0
libtpu: 0.0.40
codegen_flags: <defaults>
</compile_context>

<pallas_src>
import functools

import jax
import jax.numpy as jnp
from jax.experimental import pallas as pl
from jax.experimental.pallas import tpu as pltpu


# --------------------------------------------------------------------------
# Kernels
# --------------------------------------------------------------------------
def _rot_kernel_bias(x_ref, w_ref, b_ref, o_ref, *, bn):
    # x_ref: (bn, c, tile_hw)  w_ref: (cout, c)  b_ref: (cout, 1)
    # o_ref: (bn, cout, tile_hw)
    w = w_ref[...]
    b = b_ref[...]
    for i in range(bn):  # static unroll
        y = jnp.dot(w, x_ref[i], preferred_element_type=jnp.float32)
        o_ref[i] = (y + b).astype(o_ref.dtype)


def _rot_kernel_nobias(x_ref, w_ref, o_ref, *, bn):
    w = w_ref[...]
    for i in range(bn):  # static unroll
        y = jnp.dot(w, x_ref[i], preferred_element_type=jnp.float32)
        o_ref[i] = y.astype(o_ref.dtype)


# --------------------------------------------------------------------------
# Tiling heuristics
# --------------------------------------------------------------------------
def _default_vmem_limit():
    """Per-generation scoped VMEM limit: ~3/4 of physical, capped at 64 MiB."""
    try:
        phys = pltpu.get_tpu_info().vmem_capacity_bytes
        return int(min(64 * 1024 * 1024, phys * 3 // 4))
    except Exception:
        return 32 * 1024 * 1024


def _choose_blocking(n, c, cout, hw, in_itemsize, w_itemsize,
                     vmem_limit_bytes, target_step_bytes,
                     max_unroll=8, min_steps=4):
    """Pick (bn images per step, tile_hw lanes per image per step)."""
    # VMEM per (bn*tile_hw) lane: double-buffered in/out + one f32 intermediate.
    per_lane_vmem = 2 * (c + cout) * in_itemsize + cout * 4
    # Invariant operands (weight + bias vector), conservatively double-buffered.
    invariant_vmem = 2 * (cout * c * w_itemsize + cout * 4)
    budget = max(0, int(0.8 * vmem_limit_bytes) - invariant_vmem)
    max_lanes_vmem = max(128, budget // max(1, per_lane_vmem))

    # HBM traffic per lane; target ~1-4 MiB per grid step to hide step overhead.
    per_lane_hbm = (c + cout) * in_itemsize
    target_lanes = max(128, target_step_bytes // max(1, per_lane_hbm))

    lanes = max(128, min(max_lanes_vmem, target_lanes))
    lanes = (lanes // 128) * 128

    if hw > lanes:
        # One image per step; tile H*W. Prefer a divisor of hw (no masked
        # tail) but never shrink below half the budgeted tile.
        bn = 1
        tile_hw = lanes
        t = lanes
        floor = max(128, lanes // 2)
        while t >= floor:
            if hw % t == 0:
                tile_hw = t
                break
            t -= 128
        return bn, tile_hw

    # Whole image fits in one tile: pack images per step (bn must divide n),
    # but keep at least ~min_steps grid steps for pipelining / megacore.
    bn = 1
    if n > 1:
        bn_cap = min(max_unroll, n, max(1, lanes // max(1, hw)))
        for cand in range(bn_cap, 0, -1):
            if n % cand == 0 and (n // cand) >= min(min_steps, n):
                bn = cand
                break

    tile_hw = hw
    steps = n // bn  # one hw tile so far
    if steps < min_steps and hw >= 256:
        # Split H*W into 128-aligned tiles to reach ~min_steps total steps.
        hw_tiles_needed = -(-min_steps // steps)
        t = -(-hw // hw_tiles_needed)
        tile_hw = max(128, (t // 128) * 128)
    return bn, tile_hw


# --------------------------------------------------------------------------
# Public wrapper
# --------------------------------------------------------------------------
@functools.partial(
    jax.jit, static_argnames=("vmem_limit_bytes", "target_step_bytes")
)
def conv_layer_rotation(
    x, rotation_matrix, bias=None,
    vmem_limit_bytes=None, target_step_bytes=2 * 1024 * 1024,
):
    """Pallas equivalent of ConvLayerRotation.forward.

    x:               (N, C, H, W)   -- NCHW, like PyTorch
    rotation_matrix: (cout, cin)    -- cin == C (+1 if bias is not None)
    bias:            scalar (traced) or None
    returns:         (N, cout, H, W)
    """
    n, c, h, w = x.shape
    cout, cin = rotation_matrix.shape
    hw = h * w
    has_bias = bias is not None

    if has_bias:
        assert cin == c + 1, "rotation_matrix cin must be C+1 when bias is set"
        w_main = rotation_matrix[:, :c]
        # Bias channel is never materialized: its contribution is the constant
        # per-output-channel vector bias * R[:, C].
        bias_vec = (bias * rotation_matrix[:, c]).astype(jnp.float32).reshape(cout, 1)
    else:
        assert cin == c, "rotation_matrix cin must equal C when bias is None"
        w_main = rotation_matrix
        bias_vec = None

    if vmem_limit_bytes is None:
        vmem_limit_bytes = _default_vmem_limit()

    x3 = x.reshape(n, c, hw)  # free reshape; stays NCHW, H*W on the lane axis

    bn, tile_hw = _choose_blocking(
        n, c, cout, hw,
        jnp.dtype(x.dtype).itemsize, jnp.dtype(w_main.dtype).itemsize,
        vmem_limit_bytes, target_step_bytes,
    )
    grid = (n // bn, pl.cdiv(hw, tile_hw))

    kernel = functools.partial(
        _rot_kernel_bias if has_bias else _rot_kernel_nobias, bn=bn
    )

    in_specs = [
        pl.BlockSpec((bn, c, tile_hw), lambda i, j: (i, 0, j)),
        pl.BlockSpec((cout, c), lambda i, j: (0, 0)),
    ]
    operands = [x3, w_main]
    if has_bias:
        in_specs.append(pl.BlockSpec((cout, 1), lambda i, j: (0, 0)))
        operands.append(bias_vec)

    y3 = pl.pallas_call(
        kernel,
        out_shape=jax.ShapeDtypeStruct((n, cout, hw), x.dtype),
        grid=grid,
        in_specs=in_specs,
        out_specs=pl.BlockSpec((bn, cout, tile_hw), lambda i, j: (i, 0, j)),
        compiler_params=pltpu.CompilerParams(
            dimension_semantics=("parallel", "parallel"),
            vmem_limit_bytes=vmem_limit_bytes,
        ),
    )(*operands)

    return y3.reshape(n, cout, h, w)


# --------------------------------------------------------------------------
# Self-test
# --------------------------------------------------------------------------
if __name__ == "__main__":
    key = jax.random.PRNGKey(0)
    k_x, k_r = jax.random.split(key)

    # Small shapes: batch=2, channels=4, spatial=16x16.
    N, C, H, W = 2, 4, 16, 16
    cout = 4
    bias = 0.5
    cin = C + 1  # bias channel appended inside the module

    x = jax.random.normal(k_x, (N, C, H, W), dtype=jnp.float32)
    rotation_matrix = jax.random.normal(k_r, (cout, cin), dtype=jnp.float32)

    # --- with bias ---
    y = jax.block_until_ready(conv_layer_rotation(x, rotation_matrix, bias))
    x_aug = jnp.concatenate(
        [x, jnp.full((N, 1, H, W), bias, dtype=x.dtype)], axis=1
    )
    y_ref = jnp.einsum("oc,nchw->nohw", rotation_matrix, x_aug)
    assert y.shape == (N, cout, H, W)
    assert jnp.allclose(y, y_ref, atol=1e-5, rtol=1e-5)

    # --- without bias ---
    r_nb = rotation_matrix[:, :C]
    y_nb = jax.block_until_ready(conv_layer_rotation(x, r_nb, None))
    y_nb_ref = jnp.einsum("oc,nchw->nohw", r_nb, x)
    assert jnp.allclose(y_nb, y_nb_ref, atol=1e-5, rtol=1e-5)

    print("KERNEL_OK")
</pallas_src>

<mosaic_0001>
module attributes {stable_mosaic.version = 11 : i64} {
  func.func @_rot_kernel_bias(%arg0: i32, %arg1: i32, %arg2: memref<1x4x128xf32, #tpu.memory_space<vmem>>, %arg3: memref<4x4xf32, #tpu.memory_space<vmem>>, %arg4: memref<4x1xf32, #tpu.memory_space<vmem>>, %arg5: memref<1x4x128xf32, #tpu.memory_space<vmem>>) attributes {dimension_semantics = [#tpu.dimension_semantics<parallel>, #tpu.dimension_semantics<parallel>], iteration_bounds = array<i64: 2, 2>, scalar_prefetch = 0 : i64, scratch_operands = 0 : i64, tpu.core_type = #tpu.core_type<tc>, window_params = [{transform_indices = @transform_0, window_bounds = array<i64: 1, 4, 128>}, {pipeline_mode = #tpu.pipeline_mode<synchronous>, transform_indices = @transform_1, window_bounds = array<i64: 4, 4>}, {pipeline_mode = #tpu.pipeline_mode<synchronous>, transform_indices = @transform_2, window_bounds = array<i64: 4, 1>}, {transform_indices = @transform_3, window_bounds = array<i64: 1, 4, 128>}]} {
    %c0 = arith.constant 0 : index
    %c0_0 = arith.constant 0 : index
    %0 = vector.load %arg3[%c0, %c0_0] : memref<4x4xf32, #tpu.memory_space<vmem>>, vector<4x4xf32>
    %c0_1 = arith.constant 0 : index
    %c0_2 = arith.constant 0 : index
    %1 = vector.load %arg4[%c0_1, %c0_2] : memref<4x1xf32, #tpu.memory_space<vmem>>, vector<4x1xf32>
    %c0_3 = arith.constant 0 : index
    %c0_4 = arith.constant 0 : index
    %c0_5 = arith.constant 0 : index
    %2 = vector.load %arg2[%c0_3, %c0_4, %c0_5] : memref<1x4x128xf32, #tpu.memory_space<vmem>>, vector<1x4x128xf32>
    %3 = vector.shape_cast %2 : vector<1x4x128xf32> to vector<4x128xf32>
    %cst = arith.constant dense<0.000000e+00> : vector<4x128xf32>
    %4 = tpu.matmul %0, %3, %cst {dimension_numbers = #tpu.dot_dimension_numbers<[1], [0], [0], [1], [0, 0, 1, 1], [], []>} : vector<4x4xf32>, vector<4x128xf32>, vector<4x128xf32> -> vector<4x128xf32>
    %5 = vector.broadcast %1 : vector<4x1xf32> to vector<4x128xf32>
    %6 = arith.addf %4, %5 : vector<4x128xf32>
    %c0_6 = arith.constant 0 : index
    %c0_7 = arith.constant 0 : index
    %c0_8 = arith.constant 0 : index
    %7 = vector.load %arg5[%c0_6, %c0_7, %c0_8] : memref<1x4x128xf32, #tpu.memory_space<vmem>>, vector<1x4x128xf32>
    %8 = vector.shape_cast %7 : vector<1x4x128xf32> to vector<4x128xf32>
    %9 = vector.shape_cast %6 : vector<4x128xf32> to vector<1x4x128xf32>
    tpu.vector_store %arg5[%c0_6, %c0_7, %c0_8], %9 {strides = array<i32>} : memref<1x4x128xf32, #tpu.memory_space<vmem>>, vector<1x4x128xf32>,
    return
  }
  func.func @transform_0(%arg0: i32, %arg1: i32) -> (i32, i32, i32) {
    %c0_i32 = arith.constant 0 : i32
    %c0_i32_0 = arith.constant 0 : i32
    return %arg0, %c0_i32, %arg1 : i32, i32, i32
  }
  func.func @transform_1(%arg0: i32, %arg1: i32) -> (i32, i32) {
    %c0_i32 = arith.constant 0 : i32
    %c0_i32_0 = arith.constant 0 : i32
    %c0_i32_1 = arith.constant 0 : i32
    return %c0_i32, %c0_i32_0 : i32, i32
  }
  func.func @transform_2(%arg0: i32, %arg1: i32) -> (i32, i32) {
    %c0_i32 = arith.constant 0 : i32
    %c0_i32_0 = arith.constant 0 : i32
    %c0_i32_1 = arith.constant 0 : i32
    return %c0_i32, %c0_i32_0 : i32, i32
  }
  func.func @transform_3(%arg0: i32, %arg1: i32) -> (i32, i32, i32) {
    %c0_i32 = arith.constant 0 : i32
    %c0_i32_0 = arith.constant 0 : i32
    return %arg0, %c0_i32, %arg1 : i32, i32, i32
  }
}

</mosaic_0001>

<llo_original>
// kernel: conv_layer_rotation.1
$region0: #{conv_layer_rotation.1}
  #allocation0 [shape = 'u32[]', space=smem, size = 0x4, offset = 0x4, fixed_abs, tag = 'smem constant byte address 0x4 - core index']
  #allocation1 [shape = 'u32[72,128]{1,0:T(1,128)}', space=vmem, size = 0x9000, scoped, tag = 'internal scratch']
  %s0 = inlined_call_operand.vmem [shape: f32[2,4,256], index: 0, kind: input, shape index: {}]
  %s1 = inlined_call_operand.vmem [shape: f32[4,4], index: 1, kind: input, shape index: {}]
  %s2 = inlined_call_operand.vmem [shape: f32[4,1], index: 2, kind: input, shape index: {}]
  %s3 = inlined_call_operand.vmem [shape: f32[2,4,256], index: 3, kind: output, shape index: {}]
  %s4 = sld [smem:[#allocation0]]
  $region45: #{conv_layer_rotation.1} parent=0
    _
  %s6 = ssub.s32 1, %s4
  %s7 = scalar_select 0, %s6, %s4
  loop: start=0, step=1, limit=6
  $region2: #{conv_layer_rotation.1} parent=0 // loop_pre_header
    _
  $region3: #{conv_layer_rotation.1} parent=0 // loop_header
    %s9 = sphi 0, %s13
    %p10 = scmp.ge.s32.totalorder %s9, 6
    %s16 = sphi 0, %s28
    %s17 = sphi 0, %s24
    %s18 = sphi 0, %s16
    %s19 = sphi 0, %s17
    %s20 = sphi 0, %s18
    %s21 = sphi 0, %s19
    %s33 = sphi 0, %s35
    %s36 = sphi 0, %s33
    %s37 = sphi 0, %s36
    %s53 = sphi 0, %s37
    %s57 = sphi 0, %s57
    %s59 = sphi 0, %s57
    %s60 = sphi 0, %s59
    %s74 = sphi 0, %s60
    %s78 = sphi 0, %s78
    %s80 = sphi 0, %s78
    %s81 = sphi 0, %s80
    %s95 = sphi 0, %s81
    %s103 = sphi 0, %s105
    %s106 = sphi 0, %s103
    %s107 = sphi 0, %s106
    %s123 = sphi 0, %s107
  $region4: #{conv_layer_rotation.1} parent=0 // loop_header_branch
    %12 = sbr.rel (%p10) target = $region8
  $region5: #{conv_layer_rotation.1} parent=0 // loop_body
    %s14 = ssub.s32 %s9, 1
    %s15 = ssub.s32 %s9, 2
    %s22 = sadd.s32 1, %s17
    %p23 = scmp.ge.s32.totalorder %s22, 2
    %s24 = scalar_select %p23, 0, %s22
    %s25 = sadd.s32 1, %s16
    %s26 = scalar_select %p23, %s25, %s16
    %p27 = scmp.ge.s32.totalorder %s26, 2
    %s28 = scalar_select %p27, 0, %s26
    %s29 = ssub.s32 %s16, %s28
    %s30 = ssub.s32 %s17, %s24
    %s31 = sor.u32 %s29, %s30
    %p32 = scmp.eq.s32.totalorder %s31, 0
    %s34 = sadd.s32 %s33, 1
    %s35 = scalar_select %p32, %s33, %s34
    %p38 = pneg %p32
    %p39 = scmp.eq.s32.totalorder %s9, 3
    %p40 = por %p38, %p39
    %p41 = scmp.ne.s32.totalorder %s33, %s36
    %p42 = scmp.eq.s32.totalorder %s9, 0
    %p43 = por %p41, %p42
    %p44 = scmp.ne.s32.totalorder %s33, %s36
    %p45 = scmp.eq.s32.totalorder %s14, 3
    %p46 = por %p44, %p45
    %p47 = scmp.ne.s32.totalorder %s36, %s37
    %p48 = scmp.eq.s32.totalorder %s14, 0
    %p49 = por %p47, %p48
    %p50 = scmp.ne.s32.totalorder %s36, %s37
    %p51 = scmp.eq.s32.totalorder %s15, 3
    %p52 = por %p50, %p51
    %p54 = scmp.ne.s32.totalorder %s37, %s53
    %p55 = scmp.eq.s32.totalorder %s15, 0
    %p56 = por %p54, %p55
    %s58 = sadd.s32 %s57, 1
    %p61 = scmp.eq.s32.totalorder %s9, 3
    %p62 = scmp.ne.s32.totalorder %s57, %s59
    %p63 = scmp.eq.s32.totalorder %s9, 0
    %p64 = por %p62, %p63
    %p65 = scmp.ne.s32.totalorder %s57, %s59
    %p66 = scmp.eq.s32.totalorder %s14, 3
    %p67 = por %p65, %p66
    %p68 = scmp.ne.s32.totalorder %s59, %s60
    %p69 = scmp.eq.s32.totalorder %s14, 0
    %p70 = por %p68, %p69
    %p71 = scmp.ne.s32.totalorder %s59, %s60
    %p72 = scmp.eq.s32.totalorder %s15, 3
    %p73 = por %p71, %p72
    %p75 = scmp.ne.s32.totalorder %s60, %s74
    %p76 = scmp.eq.s32.totalorder %s15, 0
    %p77 = por %p75, %p76
    %s79 = sadd.s32 %s78, 1
    %p82 = scmp.eq.s32.totalorder %s9, 3
    %p83 = scmp.ne.s32.totalorder %s78, %s80
    %p84 = scmp.eq.s32.totalorder %s9, 0
    %p85 = por %p83, %p84
    %p86 = scmp.ne.s32.totalorder %s78, %s80
    %p87 = scmp.eq.s32.totalorder %s14, 3
    %p88 = por %p86, %p87
    %p89 = scmp.ne.s32.totalorder %s80, %s81
    %p90 = scmp.eq.s32.totalorder %s14, 0
    %p91 = por %p89, %p90
    %p92 = scmp.ne.s32.totalorder %s80, %s81
    %p93 = scmp.eq.s32.totalorder %s15, 3
    %p94 = por %p92, %p93
    %p96 = scmp.ne.s32.totalorder %s81, %s95
    %p97 = scmp.eq.s32.totalorder %s15, 0
    %p98 = por %p96, %p97
    %s99 = ssub.s32 %s16, %s28
    %s100 = ssub.s32 %s17, %s24
    %s101 = sor.u32 %s99, %s100
    %p102 = scmp.eq.s32.totalorder %s101, 0
    %s104 = sadd.s32 %s103, 1
    %s105 = scalar_select %p102, %s103, %s104
    %p108 = pneg %p102
    %p109 = scmp.eq.s32.totalorder %s9, 3
    %p110 = por %p108, %p109
    %p111 = scmp.ne.s32.totalorder %s103, %s106
    %p112 = scmp.eq.s32.totalorder %s9, 0
    %p113 = por %p111, %p112
    %p114 = scmp.ne.s32.totalorder %s103, %s106
    %p115 = scmp.eq.s32.totalorder %s14, 3
    %p116 = por %p114, %p115
    %p117 = scmp.ne.s32.totalorder %s106, %s107
    %p118 = scmp.eq.s32.totalorder %s14, 0
    %p119 = por %p117, %p118
    %p120 = scmp.ne.s32.totalorder %s106, %s107
    %p121 = scmp.eq.s32.totalorder %s15, 3
    %p122 = por %p120, %p121
    %p124 = scmp.ne.s32.totalorder %s107, %s123
    %p125 = scmp.eq.s32.totalorder %s15, 0
    %p126 = por %p124, %p125
    %p127 = scmp.le.s32.totalorder 1, %s9
    %p128 = scmp.lt.s32.totalorder %s9, 5
    %p129 = pnand %p127, %p128
    %p130 = pneg %p129
    // Predicated region
    $region9: #{conv_layer_rotation.1} parent=5 // pred_check
      _
    $region10: #{conv_layer_rotation.1} parent=5 // pred_check_branch
      %132 = sbr.rel (%p129) target = $region12
    $region11: #{conv_layer_rotation.1} parent=5 // pred_region
      %s133 = ssub.s32 %s9, 1
      // Predicated region
      $region13: #{conv_layer_rotation.1} parent=11 // pred_check
        %p134 = pneg %p70
      $region14: #{conv_layer_rotation.1} parent=11 // pred_check_branch
        %136 = sbr.rel (%p134) target = $region16
      $region15: #{conv_layer_rotation.1} parent=11 // pred_region
        _
      $region16: #{conv_layer_rotation.1} parent=11 // pred_fallthru
        _
      // Predicated region
      $region17: #{conv_layer_rotation.1} parent=11 // pred_check
        %p137 = pneg %p91
      $region18: #{conv_layer_rotation.1} parent=11 // pred_check_branch
        %139 = sbr.rel (%p137) target = $region20
      $region19: #{conv_layer_rotation.1} parent=11 // pred_region
        _
      $region20: #{conv_layer_rotation.1} parent=11 // pred_fallthru
        _
    $region12: #{conv_layer_rotation.1} parent=5 // pred_fallthru
      _
    %p140 = scmp.lt.s32.totalorder %s9, 4
    // Predicated region
    $region21: #{conv_layer_rotation.1} parent=5 // pred_check
      %p141 = pneg %p140
    $region22: #{conv_layer_rotation.1} parent=5 // pred_check_branch
      %143 = sbr.rel (%p141) target = $region24
    $region23: #{conv_layer_rotation.1} parent=5 // pred_region
      // Predicated region
      $region25: #{conv_layer_rotation.1} parent=23 // pred_check
        %p144 = pneg %p43
      $region26: #{conv_layer_rotation.1} parent=23 // pred_check_branch
        %146 = sbr.rel (%p144) target = $region28
      $region27: #{conv_layer_rotation.1} parent=23 // pred_region
        %p147 = scmp.lt.s32.totalorder %s16, 1
        %s148 = scalar_select %p147, %s16, 1
        %p149 = scmp.lt.s32.totalorder %s17, 1
        %s150 = scalar_select %p149, %s17, 1
        %s151 = smul.addr %s148, 2
        %s152 = sadd.s32 %s150, %s151
        %s153 = smul.addr %s152, 4
        %s154 = scalar_lea.vmem %s0, %s153
      $region28: #{conv_layer_rotation.1} parent=23 // pred_fallthru
        _
    $region24: #{conv_layer_rotation.1} parent=5 // pred_fallthru
      _
    %p155 = scmp.le.s32.totalorder 1, %s9
    %p156 = scmp.lt.s32.totalorder %s9, 5
    %p157 = pnand %p155, %p156
    %p158 = pneg %p157
    // Predicated region
    $region29: #{conv_layer_rotation.1} parent=5 // pred_check
      _
    $region30: #{conv_layer_rotation.1} parent=5 // pred_check_branch
      %160 = sbr.rel (%p157) target = $region32
    $region31: #{conv_layer_rotation.1} parent=5 // pred_region
      %s161 = ssub.s32 %s9, 1
      %p162 = scmp.lt.s32.totalorder %s18, 1
      %s163 = scalar_select %p162, %s18, 1
      %p164 = scmp.lt.s32.totalorder %s19, 1
      %s165 = scalar_select %p164, %s19, 1
      %s166 = smul.addr %s163, 2
      %s167 = sadd.s32 %s165, %s166
      %s168 = smul.addr %s167, 4
      %s169 = scalar_lea.vmem %s0, %s168
      %p170 = pneg %p49
      %p171 = pneg %p46
      %p172 = pneg %p70
      %p173 = pneg %p67
      %p174 = pneg %p91
      %p175 = pneg %p88
      %p176 = pneg %p119
      %p177 = pneg %p116
      %p178 = scmp.lt.s32.totalorder %s18, 1
      %s179 = scalar_select %p178, %s18, 1
      %p180 = scmp.lt.s32.totalorder %s19, 1
      %s181 = scalar_select %p180, %s19, 1
      %s182 = smul.addr %s179, 2
      %s183 = sadd.s32 %s181, %s182
      %s184 = smul.addr %s183, 4
      %s185 = scalar_lea.vmem %s3, %s184
      %p186 = scmp.lt.s32.totalorder %s18, 1
      %s187 = scalar_select %p186, %s18, 1
      %p188 = scmp.lt.s32.totalorder %s19, 1
      %s189 = scalar_select %p188, %s19, 1
      %s190 = smul.addr %s187, 2
      %s191 = sadd.s32 %s189, %s190
      %s192 = smul.addr %s191, 4
      %s193 = scalar_lea.vmem %s0, %s192
      %p194 = scmp.lt.s32.totalorder %s18, 1
      %s195 = scalar_select %p194, %s18, 1
      %p196 = scmp.lt.s32.totalorder %s19, 1
      %s197 = scalar_select %p196, %s19, 1
      %s198 = smul.addr %s195, 2
      %s199 = sadd.s32 %s197, %s198
      %s200 = smul.addr %s199, 4
      %s201 = scalar_lea.vmem %s3, %s200
      %v202 = vld [vmem:[%s1] sm:$0xf]
      %v203 = vld [vmem:[%s2] sm:$0xf]
      %v204 = vld [vmem:[%s193] sm:$0xf]
      %206 = vset.pattern.permute.xlu0 0
      %207 = vperm.xlu0 %206, %v203
      %v208 = vpop.permute.xlu0 %207
      %vm210 = vcmask 31744
      %v212 = vsel %vm210, %v202, 0
      %vm214 = vcmask 1043456
      %v216 = vsel %vm214, %v204, 0
      %218 = vmatpush.msra.mxu0 0.0
      %219 = vmatpush.msra.mxu0 0.0
      %220 = vmatpush.msra.mxu0 0.0
      %221 = vmatpush.msra.mxu0 0.0
      %222 = vmatpush.msra.mxu0 0.0
      %223 = vmatpush.msra.mxu0 0.0
      %224 = vmatpush.msra.mxu0 0.0
      %225 = vmatpush.msra.mxu0 0.0
      %226 = vmatpush.msra.mxu0 0.0
      %227 = vmatpush.msra.mxu0 0.0
      %228 = vmatpush.msra.mxu0 0.0
      %229 = vmatpush.msra.mxu0 0.0
      %230 = vmatpush.msra.mxu0 0.0
      %231 = vmatpush.msra.mxu0 0.0
      %232 = vmatpush.msra.mxu0 0.0
      %233 = vmatpush.msra.mxu0 %v216
      %234 = vmatmul.f32.gmra.mxu0 %v212
      %v235 = vpop.f32.mrf.mxu0
      %v236 = vadd.f32 %v208, %v235
      %237 = vdwg.mxu0
      %238 = vst [vmem:[%s201] sm:$0xf] %v236
      %p239 = scmp.lt.s32.totalorder %s18, 1
      %s240 = scalar_select %p239, %s18, 1
      %p241 = scmp.lt.s32.totalorder %s19, 1
      %s242 = scalar_select %p241, %s19, 1
      %s243 = smul.addr %s240, 2
      %s244 = sadd.s32 %s242, %s243
      %s245 = smul.addr %s244, 4
      %s246 = scalar_lea.vmem %s3, %s245
      // Predicated region
      $region33: #{conv_layer_rotation.1} parent=31 // pred_check
        %p247 = pneg %p116
      $region34: #{conv_layer_rotation.1} parent=31 // pred_check_branch
        %249 = sbr.rel (%p247) target = $region36
      $region35: #{conv_layer_rotation.1} parent=31 // pred_region
        _
      $region36: #{conv_layer_rotation.1} parent=31 // pred_fallthru
        _
    $region32: #{conv_layer_rotation.1} parent=5 // pred_fallthru
      _
    %p250 = scmp.le.s32.totalorder 2, %s9
    // Predicated region
    $region37: #{conv_layer_rotation.1} parent=5 // pred_check
      %p251 = pneg %p250
    $region38: #{conv_layer_rotation.1} parent=5 // pred_check_branch
      %253 = sbr.rel (%p251) target = $region40
    $region39: #{conv_layer_rotation.1} parent=5 // pred_region
      %s254 = ssub.s32 %s9, 2
      // Predicated region
      $region41: #{conv_layer_rotation.1} parent=39 // pred_check
        %p255 = pneg %p122
      $region42: #{conv_layer_rotation.1} parent=39 // pred_check_branch
        %257 = sbr.rel (%p255) target = $region44
      $region43: #{conv_layer_rotation.1} parent=39 // pred_region
        %p258 = scmp.lt.s32.totalorder %s20, 1
        %s259 = scalar_select %p258, %s20, 1
        %p260 = scmp.lt.s32.totalorder %s21, 1
        %s261 = scalar_select %p260, %s21, 1
        %s262 = smul.addr %s259, 2
        %s263 = sadd.s32 %s261, %s262
        %s264 = smul.addr %s263, 4
        %s265 = scalar_lea.vmem %s3, %s264
      $region44: #{conv_layer_rotation.1} parent=39 // pred_fallthru
        _
    $region40: #{conv_layer_rotation.1} parent=5 // pred_fallthru
      _
  $region6: #{conv_layer_rotation.1} parent=0 // loop_footer
    %s13 = sadd.s32 1, %s9
  $region7: #{conv_layer_rotation.1} parent=0 // loop_footer_branch
    %8 = sbr.rel target = $region3
  $region8: #{conv_layer_rotation.1} parent=0 // loop_exit
    _

</llo_original>
